<compile_context>
chip_gen: v7x
topology: tpu7x:2x2x1
jax: 0.10.0
libtpu: 0.0.40
codegen_flags: <defaults>
</compile_context>

<pallas_src>
import functools

import jax
import jax.numpy as jnp
from jax import lax
from jax.experimental import pallas as pl
from jax.experimental.pallas import tpu as pltpu


# -----------------------------------------------------------------------------
# helpers
# -----------------------------------------------------------------------------
def _round_up(n, m):
    return ((n + m - 1) // m) * m


def _cdiv(a, b):
    return (a + b - 1) // b


def _vmem_limit_bytes():
    """Per-generation VMEM limit: physical capacity minus headroom."""
    try:
        info = pltpu.get_tpu_info()
        cap = int(getattr(info, "vmem_capacity_bytes", 128 * 1024 * 1024))
    except Exception:
        cap = 64 * 1024 * 1024
    return max(32 * 1024 * 1024, cap - 16 * 1024 * 1024)


def _preferred_lane_tile():
    """v6e/v7x MXUs are 2x256^2 -> prefer 256-wide N tiles; v5e (4x128^2) -> 128."""
    try:
        info = pltpu.get_tpu_info()
        ver = str(getattr(info, "chip_version", "")).lower()
        if ("v6" in ver) or ("v7" in ver):
            return 256
    except Exception:
        pass
    return 128


# -----------------------------------------------------------------------------
# Pallas kernel: one phase-stacked matmul tile + fused scale/shift/activation
# -----------------------------------------------------------------------------
def _subpixel_matmul_kernel(x_ref, w_ref, ss_ref, o_ref, *,
                            th, wq, taps_h, taps_w, rows_tiled, act):
    # x_ref : (1, XH, XW, Cin_p)          bf16
    # w_ref : (taps_h*taps_w*Cin_p, tn)   bf16  (phase-stacked, pre-packed)
    # ss_ref: (2, tn)                     f32   (row 0 = scale, row 1 = shift)
    # o_ref : (1, th, wq, tn)             out dtype
    if rows_tiled:
        h0 = 0
    else:
        h0 = pl.multiple_of(pl.program_id(2) * th, th)

    # im2col on the channel axis: fold all (uh, uw) taps into one contraction.
    parts = []
    for uh in range(taps_h):
        for uw in range(taps_w):
            parts.append(x_ref[0, pl.ds(h0 + uh, th), pl.ds(uw, wq), :])
    lhs = parts[0] if len(parts) == 1 else jnp.concatenate(parts, axis=-1)

    y = lax.dot_general(lhs, w_ref[...],
                        dimension_numbers=(((2,), (0,)), ((), ())),
                        preferred_element_type=jnp.float32)
    y = y * ss_ref[0] + ss_ref[1]          # conv bias + folded BN (f32 epilogue)
    if act == "relu":
        y = jnp.maximum(y, 0.0)
    o_ref[0] = y.astype(o_ref.dtype)


# -----------------------------------------------------------------------------
# Wrapper
# -----------------------------------------------------------------------------
def conv_transpose2d_block(x_nhwc, w_pack, ss_pack, *, cout, kernel_size, stride,
                           padding, dilation=(1, 1), act="none",
                           h_tile=32, out_dtype=jnp.float32):
    """ConvTranspose2d(bias folded) + norm(folded) + activation, NHWC in/out."""
    B, H, W, Cin = x_nhwc.shape
    kH, kW = kernel_size
    sh, sw = stride
    ph, pw = padding
    dh, dw = dilation
    if (dh, dw) != (1, 1):
        raise NotImplementedError("dilation != 1 not supported")  # see TODO above
    assert 0 <= ph < kH and 0 <= pw < kW, "require 0 <= padding < kernel_size"

    H_out = (H - 1) * sh - 2 * ph + kH
    W_out = (W - 1) * sw - 2 * pw + kW

    Th = _cdiv(kH, sh)                      # taps per phase (rows)
    Tw = _cdiv(kW, sw)                      # taps per phase (cols)
    Qh = _cdiv(H_out + ph, sh)              # sub-pixel grid extents
    Qw = _cdiv(W_out + pw, sw)

    cin_p = _round_up(Cin, 8)
    n_real = sh * sw * cout                 # phase-stacked output channels
    n_pad = _round_up(n_real, 128)          # lane-dense stores
    kdim, n_pack = w_pack.shape
    assert kdim == Th * Tw * cin_p and n_pack == n_pad, "weight pack mismatch"

    th = min(h_tile, Qh)
    Qh_pad = _round_up(Qh, th)              # remainder rows handled by padding

    pref = _preferred_lane_tile()
    tn = pref if (n_pad % pref == 0) else 128

    rows_tiled = (Th == 1)                  # K == stride case: clean row tiling
    XW = Qw + Tw - 1
    XH = Qh_pad + Th - 1

    # Single fused prep pass: bf16 cast + halo / row-remainder / channel pad.
    x_prep = jnp.pad(
        x_nhwc.astype(jnp.bfloat16),
        ((0, 0), (Th - 1, Qh_pad - H), (Tw - 1, Qw - W), (0, cin_p - Cin)))

    if rows_tiled:
        x_spec = pl.BlockSpec((1, th, XW, cin_p), lambda b, n, h: (b, h, 0, 0))
    else:
        x_spec = pl.BlockSpec((1, XH, XW, cin_p), lambda b, n, h: (b, 0, 0, 0))

    kern = functools.partial(
        _subpixel_matmul_kernel, th=th, wq=Qw, taps_h=Th, taps_w=Tw,
        rows_tiled=rows_tiled, act=act)

    grid = (B, n_pad // tn, Qh_pad // th)
    out_p = pl.pallas_call(
        kern,
        out_shape=jax.ShapeDtypeStruct((B, Qh_pad, Qw, n_pad), out_dtype),
        grid=grid,
        in_specs=[
            x_spec,
            pl.BlockSpec((kdim, tn), lambda b, n, h: (0, n)),
            pl.BlockSpec((2, tn), lambda b, n, h: (0, n)),
        ],
        out_specs=pl.BlockSpec((1, th, Qw, tn), lambda b, n, h: (b, h, 0, n)),
        compiler_params=pltpu.CompilerParams(
            dimension_semantics=("parallel", "parallel", "parallel"),
            vmem_limit_bytes=_vmem_limit_bytes()),
    )(x_prep, w_pack, ss_pack)

    # Depth-to-space (pixel shuffle) + crop — one fused XLA transpose/copy.
    y = out_p[..., :n_real].reshape(B, Qh_pad, Qw, sh, sw, cout)
    y = jnp.transpose(y, (0, 1, 3, 2, 4, 5)).reshape(B, Qh_pad * sh, Qw * sw, cout)
    return y[:, ph:ph + H_out, pw:pw + W_out, :]


# -----------------------------------------------------------------------------
# Deterministic parameters (PyTorch layout) + one-time kernel weight packing
# -----------------------------------------------------------------------------
def init_params(key, cin, cout, kH, kW, stride, norm="bn"):
    sh, sw = stride
    k1, k2, k3, k4 = jax.random.split(key, 4)
    fan = float(cin * kH * kW)
    bound = 1.0 / (fan ** 0.5)
    # PyTorch ConvTranspose2d weight layout: (Cin, Cout, kH, kW), bias (Cout,).
    w_pt = jax.random.uniform(k1, (cin, cout, kH, kW), jnp.float32, -bound, bound)
    bias = jax.random.uniform(k2, (cout,), jnp.float32, -bound, bound)

    if norm == "bn":
        gamma = 1.0 + 0.05 * jax.random.normal(k3, (cout,), jnp.float32)
        beta = 0.05 * jax.random.normal(k4, (cout,), jnp.float32)
        running_mean = jnp.zeros((cout,), jnp.float32)
        running_var = jnp.ones((cout,), jnp.float32)
        eps = 1e-5
        scale = gamma / jnp.sqrt(running_var + eps)
        shift = (bias - running_mean) * scale + beta
    elif norm == "none":
        scale = jnp.ones((cout,), jnp.float32)
        shift = bias
    else:
        raise NotImplementedError(f"norm={norm!r} not implemented")  # see TODOs

    # ---- sub-pixel (pixel-shuffle) weight packing -------------------------
    Th = _cdiv(kH, sh)
    Tw = _cdiv(kW, sw)
    cin_p = _round_up(cin, 8)
    n_real = sh * sw * cout
    n_pad = _round_up(n_real, 128)

    w_big = jnp.zeros((Th, Tw, cin_p, sh, sw, cout), jnp.float32)
    for uh in range(Th):
        for uw in range(Tw):
            for ah in range(sh):
                for aw in range(sw):
                    kh = ah + (Th - 1 - uh) * sh
                    kw = aw + (Tw - 1 - uw) * sw
                    if kh < kH and kw < kW:
                        w_big = w_big.at[uh, uw, :cin, ah, aw, :].set(
                            w_pt[:, :, kh, kw])
    w_pack = jnp.zeros((Th * Tw * cin_p, n_pad), jnp.float32)
    w_pack = w_pack.at[:, :n_real].set(w_big.reshape(Th * Tw * cin_p, n_real))
    w_pack = w_pack.astype(jnp.bfloat16)

    # Fused epilogue table: row 0 = scale, row 1 = shift, broadcast over phases.
    ss = jnp.zeros((2, n_pad), jnp.float32)
    ss = ss.at[0, :n_real].set(jnp.tile(scale, sh * sw))
    ss = ss.at[1, :n_real].set(jnp.tile(shift, sh * sw))

    return {
        "w_pt": w_pt, "bias": bias,                      # PyTorch layout (for ref)
        "bn_scale": scale, "bn_shift": shift,            # unpadded (for ref)
        "w_pack": w_pack, "ss": ss,                      # kernel operands
    }


# -----------------------------------------------------------------------------
# Pure-JAX f32 reference (independent path via lax.conv_general_dilated)
# -----------------------------------------------------------------------------
def reference_forward(x_nhwc, params, stride, padding, dilation, act):
    w_pt = params["w_pt"]                       # (Cin, Cout, kH, kW)
    _, _, kH, kW = w_pt.shape
    sh, sw = stride
    ph, pw = padding
    dh, dw = dilation
    qh = dh * (kH - 1) - ph
    qw = dw * (kW - 1) - pw
    x = jnp.transpose(x_nhwc, (0, 3, 1, 2))     # NCHW
    w_flip = jnp.transpose(w_pt[:, :, ::-1, ::-1], (1, 0, 2, 3))   # (Cout,Cin,kH,kW)
    y = lax.conv_general_dilated(
        x, w_flip, window_strides=(1, 1), padding=((qh, qh), (qw, qw)),
        lhs_dilation=(sh, sw), rhs_dilation=(dh, dw),
        dimension_numbers=("NCHW", "OIHW", "NCHW"))
    y = y * params["bn_scale"][None, :, None, None] + params["bn_shift"][None, :, None, None]
    if act == "relu":
        y = jnp.maximum(y, 0.0)
    return jnp.transpose(y, (0, 2, 3, 1))       # NHWC


# -----------------------------------------------------------------------------
if __name__ == "__main__":
    # ConvTranspose2dBlock(input_dim=32, output_dim=16, kernel_size=2, stride=2,
    #                      padding=0, dilation=1, norm='bn', activation='relu')
    B, Cin, H, W = 2, 32, 16, 16
    Cout, K, stride, padding, dilation = 16, 2, 2, 0, 1
    norm, act = "bn", "relu"

    key = jax.random.PRNGKey(0)
    kx, kp = jax.random.split(key)
    x_nhwc = jax.random.normal(kx, (B, H, W, Cin), dtype=jnp.float32)
    params = init_params(kp, Cin, Cout, K, K, (stride, stride), norm=norm)

    fwd = jax.jit(functools.partial(
        conv_transpose2d_block, cout=Cout, kernel_size=(K, K),
        stride=(stride, stride), padding=(padding, padding),
        dilation=(dilation, dilation), act=act, h_tile=32))

    y = fwd(x_nhwc, params["w_pack"], params["ss"])
    jax.block_until_ready(y)

    H_out = (H - 1) * stride - 2 * padding + dilation * (K - 1) + 1
    W_out = (W - 1) * stride - 2 * padding + dilation * (K - 1) + 1
    assert y.shape == (B, H_out, W_out, Cout), y.shape
    assert bool(jnp.all(jnp.isfinite(y)))

    y_ref = reference_forward(x_nhwc, params, (stride, stride),
                              (padding, padding), (dilation, dilation), act)
    abs_err = float(jnp.max(jnp.abs(y - y_ref)))
    rel_err = abs_err / (float(jnp.max(jnp.abs(y_ref))) + 1e-6)
    assert rel_err < 2e-2, (abs_err, rel_err)   # bf16 MXU operands, f32 accumulate

    print("KERNEL_OK")
</pallas_src>

<mosaic_0001>
module attributes {stable_mosaic.version = 11 : i64} {
  func.func @_subpixel_matmul_kernel(%arg0: i32, %arg1: i32, %arg2: i32, %arg3: memref<1x16x16x32xbf16, #tpu.memory_space<vmem>>, %arg4: memref<32x128xbf16, #tpu.memory_space<vmem>>, %arg5: memref<2x128xf32, #tpu.memory_space<vmem>>, %arg6: memref<1x16x16x128xf32, #tpu.memory_space<vmem>>) attributes {dimension_semantics = [#tpu.dimension_semantics<parallel>, #tpu.dimension_semantics<parallel>, #tpu.dimension_semantics<parallel>], iteration_bounds = array<i64: 2, 1, 1>, scalar_prefetch = 0 : i64, scratch_operands = 0 : i64, tpu.core_type = #tpu.core_type<tc>, window_params = [{transform_indices = @transform_0, window_bounds = array<i64: 1, 16, 16, 32>}, {transform_indices = @transform_1, window_bounds = array<i64: 32, 128>}, {transform_indices = @transform_2, window_bounds = array<i64: 2, 128>}, {transform_indices = @transform_3, window_bounds = array<i64: 1, 16, 16, 128>}]} {
    %c0 = arith.constant 0 : index
    %c0_0 = arith.constant 0 : index
    %c0_1 = arith.constant 0 : index
    %c0_2 = arith.constant 0 : index
    %0 = vector.load %arg3[%c0, %c0_0, %c0_1, %c0_2] : memref<1x16x16x32xbf16, #tpu.memory_space<vmem>>, vector<1x16x16x32xbf16>
    %1 = vector.shape_cast %0 : vector<1x16x16x32xbf16> to vector<16x16x32xbf16>
    %c0_3 = arith.constant 0 : index
    %c0_4 = arith.constant 0 : index
    %2 = vector.load %arg4[%c0_3, %c0_4] : memref<32x128xbf16, #tpu.memory_space<vmem>>, vector<32x128xbf16>
    %cst = arith.constant dense<0.000000e+00> : vector<16x16x128xf32>
    %3 = tpu.matmul %1, %2, %cst {dimension_numbers = #tpu.dot_dimension_numbers<[2], [0], [0, 1], [1], [0, 0, 0, 1, 1, 1], [], []>} : vector<16x16x32xbf16>, vector<32x128xbf16>, vector<16x16x128xf32> -> vector<16x16x128xf32>
    %c0_5 = arith.constant 0 : index
    %c0_6 = arith.constant 0 : index
    %4 = vector.load %arg5[%c0_5, %c0_6] : memref<2x128xf32, #tpu.memory_space<vmem>>, vector<1x128xf32>
    %5 = vector.shape_cast %4 : vector<1x128xf32> to vector<128xf32>
    %6 = vector.shape_cast %5 : vector<128xf32> to vector<1x1x128xf32>
    %7 = vector.broadcast %6 : vector<1x1x128xf32> to vector<16x16x128xf32>
    %8 = arith.mulf %3, %7 : vector<16x16x128xf32>
    %c1 = arith.constant 1 : index
    %c0_7 = arith.constant 0 : index
    %9 = vector.load %arg5[%c1, %c0_7] : memref<2x128xf32, #tpu.memory_space<vmem>>, vector<1x128xf32>
    %10 = vector.shape_cast %9 : vector<1x128xf32> to vector<128xf32>
    %11 = vector.shape_cast %10 : vector<128xf32> to vector<1x1x128xf32>
    %12 = vector.broadcast %11 : vector<1x1x128xf32> to vector<16x16x128xf32>
    %13 = arith.addf %8, %12 : vector<16x16x128xf32>
    %cst_8 = arith.constant 0.000000e+00 : f32
    %14 = vector.broadcast %cst_8 : f32 to vector<16x16x128xf32>
    %15 = arith.maximumf %13, %14 : vector<16x16x128xf32>
    %c0_9 = arith.constant 0 : index
    %c0_10 = arith.constant 0 : index
    %c0_11 = arith.constant 0 : index
    %c0_12 = arith.constant 0 : index
    %16 = vector.load %arg6[%c0_9, %c0_10, %c0_11, %c0_12] : memref<1x16x16x128xf32, #tpu.memory_space<vmem>>, vector<1x16x16x128xf32>
    %17 = vector.shape_cast %16 : vector<1x16x16x128xf32> to vector<16x16x128xf32>
    %18 = vector.shape_cast %15 : vector<16x16x128xf32> to vector<1x16x16x128xf32>
    tpu.vector_store %arg6[%c0_9, %c0_10, %c0_11, %c0_12], %18 {strides = array<i32>} : memref<1x16x16x128xf32, #tpu.memory_space<vmem>>, vector<1x16x16x128xf32>,
    return
  }
  func.func @transform_0(%arg0: i32, %arg1: i32, %arg2: i32) -> (i32, i32, i32, i32) {
    %c0_i32 = arith.constant 0 : i32
    %c0_i32_0 = arith.constant 0 : i32
    %c0_i32_1 = arith.constant 0 : i32
    return %arg0, %arg2, %c0_i32, %c0_i32_0 : i32, i32, i32, i32
  }
  func.func @transform_1(%arg0: i32, %arg1: i32, %arg2: i32) -> (i32, i32) {
    %c0_i32 = arith.constant 0 : i32
    %c0_i32_0 = arith.constant 0 : i32
    return %c0_i32, %arg1 : i32, i32
  }
  func.func @transform_2(%arg0: i32, %arg1: i32, %arg2: i32) -> (i32, i32) {
    %c0_i32 = arith.constant 0 : i32
    %c0_i32_0 = arith.constant 0 : i32
    return %c0_i32, %arg1 : i32, i32
  }
  func.func @transform_3(%arg0: i32, %arg1: i32, %arg2: i32) -> (i32, i32, i32, i32) {
    %c0_i32 = arith.constant 0 : i32
    %c0_i32_0 = arith.constant 0 : i32
    return %arg0, %arg2, %c0_i32, %arg1 : i32, i32, i32, i32
  }
}

</mosaic_0001>

<llo_original>
// kernel: conv_transpose2d_block.1
$region0: #{conv_transpose2d_block.1}
  #allocation0 [shape = 'u32[]', space=smem, size = 0x4, offset = 0x4, fixed_abs, tag = 'smem constant byte address 0x4 - core index']
  #allocation1 [shape = 'u32[144,128]{1,0:T(1,128)}', space=vmem, size = 0x12000, scoped, tag = 'internal scratch']
  %s0 = inlined_call_operand.vmem [shape: bf16[2,16,16,32], index: 0, kind: input, shape index: {}]
  %s1 = inlined_call_operand.vmem [shape: bf16[32,128], index: 1, kind: input, shape index: {}]
  %s2 = inlined_call_operand.vmem [shape: f32[2,128], index: 2, kind: input, shape index: {}]
  %s3 = inlined_call_operand.vmem [shape: f32[2,16,16,128], index: 3, kind: output, shape index: {}]
  %s4 = sld [smem:[#allocation0]]
  $region45: #{conv_transpose2d_block.1} parent=0
    _
  %s6 = ssub.s32 1, %s4
  %s7 = scalar_select 0, %s6, %s4
  loop: start=0, step=1, limit=4
  $region2: #{conv_transpose2d_block.1} parent=0 // loop_pre_header
    _
  $region3: #{conv_transpose2d_block.1} parent=0 // loop_header
    %s9 = sphi 0, %s13
    %p10 = scmp.ge.s32.totalorder %s9, 4
    %s16 = sphi 0, %s35
    %s17 = sphi 0, %s31
    %s18 = sphi 0, %s27
    %s19 = sphi 0, %s16
    %s20 = sphi 0, %s17
    %s21 = sphi 0, %s18
    %s22 = sphi 0, %s19
    %s23 = sphi 0, %s20
    %s24 = sphi 0, %s21
    %s40 = sphi 0, %s42
    %s43 = sphi 0, %s40
    %s44 = sphi 0, %s43
    %s60 = sphi 0, %s44
    %s66 = sphi 0, %s68
    %s69 = sphi 0, %s66
    %s70 = sphi 0, %s69
    %s86 = sphi 0, %s70
    %s92 = sphi 0, %s94
    %s95 = sphi 0, %s92
    %s96 = sphi 0, %s95
    %s112 = sphi 0, %s96
    %s122 = sphi 0, %s124
    %s125 = sphi 0, %s122
    %s126 = sphi 0, %s125
    %s142 = sphi 0, %s126
  $region4: #{conv_transpose2d_block.1} parent=0 // loop_header_branch
    %12 = sbr.rel (%p10) target = $region8
  $region5: #{conv_transpose2d_block.1} parent=0 // loop_body
    %s14 = ssub.s32 %s9, 1
    %s15 = ssub.s32 %s9, 2
    %s25 = sadd.s32 1, %s18
    %p26 = scmp.ge.s32.totalorder %s25, 1
    %s27 = scalar_select %p26, 0, %s25
    %s28 = sadd.s32 1, %s17
    %s29 = scalar_select %p26, %s28, %s17
    %p30 = scmp.ge.s32.totalorder %s29, 1
    %s31 = scalar_select %p30, 0, %s29
    %s32 = sadd.s32 1, %s16
    %s33 = scalar_select %p30, %s32, %s16
    %p34 = scmp.ge.s32.totalorder %s33, 2
    %s35 = scalar_select %p34, 0, %s33
    %s36 = ssub.s32 %s16, %s35
    %s37 = ssub.s32 %s18, %s27
    %s38 = sor.u32 %s36, %s37
    %p39 = scmp.eq.s32.totalorder %s38, 0
    %s41 = sadd.s32 %s40, 1
    %s42 = scalar_select %p39, %s40, %s41
    %p45 = pneg %p39
    %p46 = scmp.eq.s32.totalorder %s9, 1
    %p47 = por %p45, %p46
    %p48 = scmp.ne.s32.totalorder %s40, %s43
    %p49 = scmp.eq.s32.totalorder %s9, 0
    %p50 = por %p48, %p49
    %p51 = scmp.ne.s32.totalorder %s40, %s43
    %p52 = scmp.eq.s32.totalorder %s14, 1
    %p53 = por %p51, %p52
    %p54 = scmp.ne.s32.totalorder %s43, %s44
    %p55 = scmp.eq.s32.totalorder %s14, 0
    %p56 = por %p54, %p55
    %p57 = scmp.ne.s32.totalorder %s43, %s44
    %p58 = scmp.eq.s32.totalorder %s15, 1
    %p59 = por %p57, %p58
    %p61 = scmp.ne.s32.totalorder %s44, %s60
    %p62 = scmp.eq.s32.totalorder %s15, 0
    %p63 = por %p61, %p62
    %s64 = ssub.s32 %s17, %s31
    %p65 = scmp.eq.s32.totalorder %s64, 0
    %s67 = sadd.s32 %s66, 1
    %s68 = scalar_select %p65, %s66, %s67
    %p71 = pneg %p65
    %p72 = scmp.eq.s32.totalorder %s9, 1
    %p73 = por %p71, %p72
    %p74 = scmp.ne.s32.totalorder %s66, %s69
    %p75 = scmp.eq.s32.totalorder %s9, 0
    %p76 = por %p74, %p75
    %p77 = scmp.ne.s32.totalorder %s66, %s69
    %p78 = scmp.eq.s32.totalorder %s14, 1
    %p79 = por %p77, %p78
    %p80 = scmp.ne.s32.totalorder %s69, %s70
    %p81 = scmp.eq.s32.totalorder %s14, 0
    %p82 = por %p80, %p81
    %p83 = scmp.ne.s32.totalorder %s69, %s70
    %p84 = scmp.eq.s32.totalorder %s15, 1
    %p85 = por %p83, %p84
    %p87 = scmp.ne.s32.totalorder %s70, %s86
    %p88 = scmp.eq.s32.totalorder %s15, 0
    %p89 = por %p87, %p88
    %s90 = ssub.s32 %s17, %s31
    %p91 = scmp.eq.s32.totalorder %s90, 0
    %s93 = sadd.s32 %s92, 1
    %s94 = scalar_select %p91, %s92, %s93
    %p97 = pneg %p91
    %p98 = scmp.eq.s32.totalorder %s9, 1
    %p99 = por %p97, %p98
    %p100 = scmp.ne.s32.totalorder %s92, %s95
    %p101 = scmp.eq.s32.totalorder %s9, 0
    %p102 = por %p100, %p101
    %p103 = scmp.ne.s32.totalorder %s92, %s95
    %p104 = scmp.eq.s32.totalorder %s14, 1
    %p105 = por %p103, %p104
    %p106 = scmp.ne.s32.totalorder %s95, %s96
    %p107 = scmp.eq.s32.totalorder %s14, 0
    %p108 = por %p106, %p107
    %p109 = scmp.ne.s32.totalorder %s95, %s96
    %p110 = scmp.eq.s32.totalorder %s15, 1
    %p111 = por %p109, %p110
    %p113 = scmp.ne.s32.totalorder %s96, %s112
    %p114 = scmp.eq.s32.totalorder %s15, 0
    %p115 = por %p113, %p114
    %s116 = ssub.s32 %s16, %s35
    %s117 = ssub.s32 %s18, %s27
    %s118 = sor.u32 %s116, %s117
    %s119 = ssub.s32 %s17, %s31
    %s120 = sor.u32 %s118, %s119
    %p121 = scmp.eq.s32.totalorder %s120, 0
    %s123 = sadd.s32 %s122, 1
    %s124 = scalar_select %p121, %s122, %s123
    %p127 = pneg %p121
    %p128 = scmp.eq.s32.totalorder %s9, 1
    %p129 = por %p127, %p128
    %p130 = scmp.ne.s32.totalorder %s122, %s125
    %p131 = scmp.eq.s32.totalorder %s9, 0
    %p132 = por %p130, %p131
    %p133 = scmp.ne.s32.totalorder %s122, %s125
    %p134 = scmp.eq.s32.totalorder %s14, 1
    %p135 = por %p133, %p134
    %p136 = scmp.ne.s32.totalorder %s125, %s126
    %p137 = scmp.eq.s32.totalorder %s14, 0
    %p138 = por %p136, %p137
    %p139 = scmp.ne.s32.totalorder %s125, %s126
    %p140 = scmp.eq.s32.totalorder %s15, 1
    %p141 = por %p139, %p140
    %p143 = scmp.ne.s32.totalorder %s126, %s142
    %p144 = scmp.eq.s32.totalorder %s15, 0
    %p145 = por %p143, %p144
    %p146 = scmp.le.s32.totalorder 1, %s9
    %p147 = scmp.lt.s32.totalorder %s9, 3
    %p148 = pnand %p146, %p147
    %p149 = pneg %p148
    // Predicated region
    $region9: #{conv_transpose2d_block.1} parent=5 // pred_check
      _
    $region10: #{conv_transpose2d_block.1} parent=5 // pred_check_branch
      %151 = sbr.rel (%p148) target = $region12
    $region11: #{conv_transpose2d_block.1} parent=5 // pred_region
      %s152 = ssub.s32 %s9, 1
      // Predicated region
      $region13: #{conv_transpose2d_block.1} parent=11 // pred_check
        %p153 = pneg %p82
      $region14: #{conv_transpose2d_block.1} parent=11 // pred_check_branch
        %155 = sbr.rel (%p153) target = $region16
      $region15: #{conv_transpose2d_block.1} parent=11 // pred_region
        %p156 = scmp.lt.s32.totalorder %s20, 0
        %s157 = scalar_select %p156, %s20, 0
        %s158 = smul.addr %s157, 4
        %s159 = scalar_lea.vmem %s1, %s158
      $region16: #{conv_transpose2d_block.1} parent=11 // pred_fallthru
        _
      // Predicated region
      $region17: #{conv_transpose2d_block.1} parent=11 // pred_check
        %p160 = pneg %p108
      $region18: #{conv_transpose2d_block.1} parent=11 // pred_check_branch
        %162 = sbr.rel (%p160) target = $region20
      $region19: #{conv_transpose2d_block.1} parent=11 // pred_region
        %p163 = scmp.lt.s32.totalorder %s20, 0
        %s164 = scalar_select %p163, %s20, 0
        %s165 = smul.addr %s164, 2
        %s166 = scalar_lea.vmem %s2, %s165
      $region20: #{conv_transpose2d_block.1} parent=11 // pred_fallthru
        _
    $region12: #{conv_transpose2d_block.1} parent=5 // pred_fallthru
      _
    %p167 = scmp.lt.s32.totalorder %s9, 2
    // Predicated region
    $region21: #{conv_transpose2d_block.1} parent=5 // pred_check
      %p168 = pneg %p167
    $region22: #{conv_transpose2d_block.1} parent=5 // pred_check_branch
      %170 = sbr.rel (%p168) target = $region24
    $region23: #{conv_transpose2d_block.1} parent=5 // pred_region
      // Predicated region
      $region25: #{conv_transpose2d_block.1} parent=23 // pred_check
        %p171 = pneg %p50
      $region26: #{conv_transpose2d_block.1} parent=23 // pred_check_branch
        %173 = sbr.rel (%p171) target = $region28
      $region27: #{conv_transpose2d_block.1} parent=23 // pred_region
        %s174 = smul.u32 16, %s18
        %p175 = scmp.lt.s32.totalorder %s16, 1
        %s176 = scalar_select %p175, %s16, 1
        %p177 = scmp.lt.s32.totalorder %s174, 15
        %s178 = scalar_select %p177, %s174, 15
        %s179 = smul.addr %s178, 2
        %s180 = smul.addr %s176, 32
        %s181 = sadd.s32 %s179, %s180
        %s182 = smul.addr %s181, 4
        %s183 = scalar_lea.vmem %s0, %s182
        %s184 = smul.u32 16, %s18
      $region28: #{conv_transpose2d_block.1} parent=23 // pred_fallthru
        _
    $region24: #{conv_transpose2d_block.1} parent=5 // pred_fallthru
      _
    %p185 = scmp.le.s32.totalorder 1, %s9
    %p186 = scmp.lt.s32.totalorder %s9, 3
    %p187 = pnand %p185, %p186
    %p188 = pneg %p187
    // Predicated region
    $region29: #{conv_transpose2d_block.1} parent=5 // pred_check
      _
    $region30: #{conv_transpose2d_block.1} parent=5 // pred_check_branch
      %190 = sbr.rel (%p187) target = $region32
    $region31: #{conv_transpose2d_block.1} parent=5 // pred_region
      %s191 = ssub.s32 %s9, 1
      %s192 = smul.u32 16, %s21
      %p193 = scmp.lt.s32.totalorder %s19, 1
      %s194 = scalar_select %p193, %s19, 1
      %p195 = scmp.lt.s32.totalorder %s192, 15
      %s196 = scalar_select %p195, %s192, 15
      %s197 = smul.addr %s196, 2
      %s198 = smul.addr %s194, 32
      %s199 = sadd.s32 %s197, %s198
      %s200 = smul.addr %s199, 4
      %s201 = scalar_lea.vmem %s0, %s200
      %p202 = pneg %p56
      %p203 = pneg %p53
      %p204 = scmp.lt.s32.totalorder %s20, 0
      %s205 = scalar_select %p204, %s20, 0
      %s206 = smul.addr %s205, 4
      %s207 = scalar_lea.vmem %s1, %s206
      %p208 = pneg %p82
      %p209 = pneg %p79
      %p210 = scmp.lt.s32.totalorder %s20, 0
      %s211 = scalar_select %p210, %s20, 0
      %s212 = smul.addr %s211, 2
      %s213 = scalar_lea.vmem %s2, %s212
      %p214 = pneg %p108
      %p215 = pneg %p105
      %p216 = pneg %p138
      %p217 = pneg %p135
      %s218 = smul.u32 16, %s21
      %p219 = scmp.lt.s32.totalorder %s19, 1
      %s220 = scalar_select %p219, %s19, 1
      %p221 = scmp.lt.s32.totalorder %s218, 15
      %s222 = scalar_select %p221, %s218, 15
      %p223 = scmp.lt.s32.totalorder %s20, 0
      %s224 = scalar_select %p223, %s20, 0
      %s225 = smul.addr %s222, 2
      %s226 = sadd.s32 %s224, %s225
      %s227 = smul.addr %s220, 32
      %s228 = sadd.s32 %s226, %s227
      %s229 = smul.addr %s228, 8
      %s230 = scalar_lea.vmem %s3, %s229
      %s231 = smul.u32 16, %s21
      %p232 = scmp.lt.s32.totalorder %s19, 1
      %s233 = scalar_select %p232, %s19, 1
      %p234 = scmp.lt.s32.totalorder %s231, 15
      %s235 = scalar_select %p234, %s231, 15
      %s236 = smul.addr %s235, 2
      %s237 = smul.addr %s233, 32
      %s238 = sadd.s32 %s236, %s237
      %s239 = smul.addr %s238, 4
      %s240 = scalar_lea.vmem %s0, %s239
      %s241 = smul.u32 16, %s21
      %p242 = scmp.lt.s32.totalorder %s20, 0
      %s243 = scalar_select %p242, %s20, 0
      %s244 = smul.addr %s243, 4
      %s245 = scalar_lea.vmem %s1, %s244
      %p246 = scmp.lt.s32.totalorder %s20, 0
      %s247 = scalar_select %p246, %s20, 0
      %s248 = smul.addr %s247, 2
      %s249 = scalar_lea.vmem %s2, %s248
      %s250 = smul.u32 16, %s21
      %p251 = scmp.lt.s32.totalorder %s19, 1
      %s252 = scalar_select %p251, %s19, 1
      %p253 = scmp.lt.s32.totalorder %s250, 15
      %s254 = scalar_select %p253, %s250, 15
      %p255 = scmp.lt.s32.totalorder %s20, 0
      %s256 = scalar_select %p255, %s20, 0
      %s257 = smul.addr %s254, 2
      %s258 = sadd.s32 %s256, %s257
      %s259 = smul.addr %s252, 32
      %s260 = sadd.s32 %s258, %s259
      %s261 = smul.addr %s260, 8
      %s262 = scalar_lea.vmem %s3, %s261
      %s263 = smul.u32 16, %s21
      %v265 = vld [vmem:[%s240] sm:$0xf]
      %v266 = vld [vmem:[%s240 + $0x4] sm:$0xf]
      %v267 = vld [vmem:[%s240 + $0x8] sm:$0xf]
      %v268 = vld [vmem:[%s240 + $0xc] sm:$0xf]
      %v269 = vld [vmem:[%s240 + $0x10] sm:$0xf]
      %v270 = vld [vmem:[%s240 + $0x14] sm:$0xf]
      %v271 = vld [vmem:[%s240 + $0x18] sm:$0xf]
      %v272 = vld [vmem:[%s240 + $0x1c] sm:$0xf]
      %v273 = vld [vmem:[%s240 + $0x20] sm:$0xf]
      %v274 = vld [vmem:[%s240 + $0x24] sm:$0xf]
      %v275 = vld [vmem:[%s240 + $0x28] sm:$0xf]
      %v276 = vld [vmem:[%s240 + $0x2c] sm:$0xf]
      %v277 = vld [vmem:[%s240 + $0x30] sm:$0xf]
      %v278 = vld [vmem:[%s240 + $0x34] sm:$0xf]
      %v279 = vld [vmem:[%s240 + $0x38] sm:$0xf]
      %v280 = vld [vmem:[%s240 + $0x3c] sm:$0xf]
      %v281 = vld [vmem:[%s240 + $0x40] sm:$0xf]
      %v282 = vld [vmem:[%s240 + $0x44] sm:$0xf]
      %v283 = vld [vmem:[%s240 + $0x48] sm:$0xf]
      %v284 = vld [vmem:[%s240 + $0x4c] sm:$0xf]
      %v285 = vld [vmem:[%s240 + $0x50] sm:$0xf]
      %v286 = vld [vmem:[%s240 + $0x54] sm:$0xf]
      %v287 = vld [vmem:[%s240 + $0x58] sm:$0xf]
      %v288 = vld [vmem:[%s240 + $0x5c] sm:$0xf]
      %v289 = vld [vmem:[%s240 + $0x60] sm:$0xf]
      %v290 = vld [vmem:[%s240 + $0x64] sm:$0xf]
      %v291 = vld [vmem:[%s240 + $0x68] sm:$0xf]
      %v292 = vld [vmem:[%s240 + $0x6c] sm:$0xf]
      %v293 = vld [vmem:[%s240 + $0x70] sm:$0xf]
      %v294 = vld [vmem:[%s240 + $0x74] sm:$0xf]
      %v295 = vld [vmem:[%s240 + $0x78] sm:$0xf]
      %v296 = vld [vmem:[%s240 + $0x7c] sm:$0xf]
      %v297 = vld [vmem:[%s245] sm:$0xf]
      %v298 = vld [vmem:[%s245 + $0x4] sm:$0xf]
      %v299 = vld [vmem:[%s245 + $0x8] sm:$0xf]
      %v300 = vld [vmem:[%s245 + $0xc] sm:$0xf]
      %v333 = vunpack.c.l.b16 %v265
      %v334 = vunpack.c.l.b16 %v266
      %v335 = vunpack.c.l.b16 %v267
      %v336 = vunpack.c.l.b16 %v268
      %v337 = vunpack.c.l.b16 %v269
      %v338 = vunpack.c.l.b16 %v270
      %v339 = vunpack.c.l.b16 %v271
      %v340 = vunpack.c.l.b16 %v272
      %v341 = vunpack.c.l.b16 %v273
      %v342 = vunpack.c.l.b16 %v274
      %v343 = vunpack.c.l.b16 %v275
      %v344 = vunpack.c.l.b16 %v276
      %v345 = vunpack.c.l.b16 %v277
      %v346 = vunpack.c.l.b16 %v278
      %v347 = vunpack.c.l.b16 %v279
      %v348 = vunpack.c.l.b16 %v280
      %v349 = vunpack.c.l.b16 %v281
      %v350 = vunpack.c.l.b16 %v282
      %v351 = vunpack.c.l.b16 %v283
      %v352 = vunpack.c.l.b16 %v284
      %v353 = vunpack.c.l.b16 %v285
      %v354 = vunpack.c.l.b16 %v286
      %v355 = vunpack.c.l.b16 %v287
      %v356 = vunpack.c.l.b16 %v288
      %v357 = vunpack.c.l.b16 %v289
      %v358 = vunpack.c.l.b16 %v290
      %v359 = vunpack.c.l.b16 %v291
      %v360 = vunpack.c.l.b16 %v292
      %v361 = vunpack.c.l.b16 %v293
      %v362 = vunpack.c.l.b16 %v294
      %v363 = vunpack.c.l.b16 %v295
      %v364 = vunpack.c.l.b16 %v296
      %v365 = vpack.c.b16 %v334, %v333
      %v366 = vpack.c.b16 %v336, %v335
      %v367 = vpack.c.b16 %v338, %v337
      %v368 = vpack.c.b16 %v340, %v339
      %v369 = vpack.c.b16 %v342, %v341
      %v370 = vpack.c.b16 %v344, %v343
      %v371 = vpack.c.b16 %v346, %v345
      %v372 = vpack.c.b16 %v348, %v347
      %v373 = vpack.c.b16 %v350, %v349
      %v374 = vpack.c.b16 %v352, %v351
      %v375 = vpack.c.b16 %v354, %v353
      %v376 = vpack.c.b16 %v356, %v355
      %v377 = vpack.c.b16 %v358, %v357
      %v378 = vpack.c.b16 %v360, %v359
      %v379 = vpack.c.b16 %v362, %v361
      %v380 = vpack.c.b16 %v364, %v363
      %v385 = vunpack.c.l.b16 %v297
      %v386 = vunpack.c.l.b16 %v298
      %v387 = vunpack.c.l.b16 %v299
      %v388 = vunpack.c.l.b16 %v300
      %v389 = vpack.c.b16 %v386, %v385
      %v390 = vpack.c.b16 %v388, %v387
      %vm393 = vcmask 261120
      %v395 = vsel %vm393, %v365, 0
      %v398 = vsel %vm393, %v366, 0
      %v401 = vsel %vm393, %v367, 0
      %v404 = vsel %vm393, %v368, 0
      %v407 = vsel %vm393, %v369, 0
      %v410 = vsel %vm393, %v370, 0
      %v413 = vsel %vm393, %v371, 0
      %v416 = vsel %vm393, %v372, 0
      %v419 = vsel %vm393, %v373, 0
      %v422 = vsel %vm393, %v374, 0
      %v425 = vsel %vm393, %v375, 0
      %v428 = vsel %vm393, %v376, 0
      %v431 = vsel %vm393, %v377, 0
      %v434 = vsel %vm393, %v378, 0
      %v437 = vsel %vm393, %v379, 0
      %v440 = vsel %vm393, %v380, 0
      %442 = vmatprep.subr.bf16.mxu0 0
      %443 = vmatpush1.bf16.msra.mxu0 %v389
      %444 = vmatprep.subr.bf16.mxu0 0
      %445 = vmatpush1.bf16.msra.mxu0 %v390
      %446 = vmatprep.subr.bf16.mxu0 0
      %447 = vmatpush1.bf16.msra.mxu0 0
      %448 = vmatprep.subr.bf16.mxu0 0
      %449 = vmatpush1.bf16.msra.mxu0 0
      %450 = vmatprep.subr.bf16.mxu0 0
      %451 = vmatpush1.bf16.msra.mxu0 0
      %452 = vmatprep.subr.bf16.mxu0 0
      %453 = vmatpush1.bf16.msra.mxu0 0
      %454 = vmatprep.subr.bf16.mxu0 0
      %455 = vmatpush1.bf16.msra.mxu0 0
      %456 = vmatprep.subr.bf16.mxu0 0
      %457 = vmatpush1.bf16.msra.mxu0 0
      %458 = vmatprep.subr.bf16.mxu0 0
      %459 = vmatpush1.bf16.msra.mxu0 0
      %460 = vmatprep.subr.bf16.mxu0 0
      %461 = vmatpush1.bf16.msra.mxu0 0
      %462 = vmatprep.subr.bf16.mxu0 0
      %463 = vmatpush1.bf16.msra.mxu0 0
      %464 = vmatprep.subr.bf16.mxu0 0
      %465 = vmatpush1.bf16.msra.mxu0 0
      %466 = vmatprep.subr.bf16.mxu0 0
      %467 = vmatpush1.bf16.msra.mxu0 0
      %468 = vmatprep.subr.bf16.mxu0 0
      %469 = vmatpush1.bf16.msra.mxu0 0
      %470 = vmatprep.subr.bf16.mxu0 0
      %471 = vmatpush1.bf16.msra.mxu0 0
      %472 = vmatprep.subr.bf16.mxu0 0
      %473 = vmatpush1.bf16.msra.mxu0 0
      %474 = vmatprep.mubr.bf16.mxu0 0
      %475 = vmatmul.mubr.bf16.gmra.mrb[0].mxu0 %v395
      %v476 = vpop.f32.mrb[0].mxu0
      %v477 = vadd.f32 0.0, %v476
      %v478 = vpop.f32.mrb[0].mxu0
      %v479 = vpop.f32.mrb[0].mxu0
      %v480 = vadd.f32 0.0, %v479
      %v481 = vpop.f32.mrb[0].mxu0
      %482 = vmatprep.mubr.bf16.mxu0 0
      %483 = vmatmul.mubr.bf16.gmra.mrb[0].mxu0 %v398
      %v484 = vpop.f32.mrb[0].mxu0
      %v485 = vadd.f32 0.0, %v484
      %v486 = vpop.f32.mrb[0].mxu0
      %v487 = vpop.f32.mrb[0].mxu0
      %v488 = vadd.f32 0.0, %v487
      %v489 = vpop.f32.mrb[0].mxu0
      %490 = vmatprep.mubr.bf16.mxu0 0
      %491 = vmatmul.mubr.bf16.gmra.mrb[0].mxu0 %v401
      %v492 = vpop.f32.mrb[0].mxu0
      %v493 = vadd.f32 0.0, %v492
      %v494 = vpop.f32.mrb[0].mxu0
      %v495 = vpop.f32.mrb[0].mxu0
      %v496 = vadd.f32 0.0, %v495
      %v497 = vpop.f32.mrb[0].mxu0
      %498 = vmatprep.mubr.bf16.mxu0 0
      %499 = vmatmul.mubr.bf16.gmra.mrb[0].mxu0 %v404
      %v500 = vpop.f32.mrb[0].mxu0
      %v501 = vadd.f32 0.0, %v500
      %v502 = vpop.f32.mrb[0].mxu0
      %v503 = vpop.f32.mrb[0].mxu0
      %v504 = vadd.f32 0.0, %v503
      %v505 = vpop.f32.mrb[0].mxu0
      %506 = vmatprep.mubr.bf16.mxu0 0
      %507 = vmatmul.mubr.bf16.gmra.mrb[0].mxu0 %v407
      %v508 = vpop.f32.mrb[0].mxu0
      %v509 = vadd.f32 0.0, %v508
      %v510 = vpop.f32.mrb[0].mxu0
      %v511 = vpop.f32.mrb[0].mxu0
      %v512 = vadd.f32 0.0, %v511
      %v513 = vpop.f32.mrb[0].mxu0
      %514 = vmatprep.mubr.bf16.mxu0 0
      %515 = vmatmul.mubr.bf16.gmra.mrb[0].mxu0 %v410
      %v516 = vpop.f32.mrb[0].mxu0
      %v517 = vadd.f32 0.0, %v516
      %v518 = vpop.f32.mrb[0].mxu0
      %v519 = vpop.f32.mrb[0].mxu0
      %v520 = vadd.f32 0.0, %v519
      %v521 = vpop.f32.mrb[0].mxu0
      %522 = vmatprep.mubr.bf16.mxu0 0
      %523 = vmatmul.mubr.bf16.gmra.mrb[0].mxu0 %v413
      %v524 = vpop.f32.mrb[0].mxu0
      %v525 = vadd.f32 0.0, %v524
      %v526 = vpop.f32.mrb[0].mxu0
      %v527 = vpop.f32.mrb[0].mxu0
      %v528 = vadd.f32 0.0, %v527
      %v529 = vpop.f32.mrb[0].mxu0
      %530 = vmatprep.mubr.bf16.mxu0 0
      %531 = vmatmul.mubr.bf16.gmra.mrb[0].mxu0 %v416
      %v532 = vpop.f32.mrb[0].mxu0
      %v533 = vadd.f32 0.0, %v532
      %v534 = vpop.f32.mrb[0].mxu0
      %v535 = vpop.f32.mrb[0].mxu0
      %v536 = vadd.f32 0.0, %v535
      %v537 = vpop.f32.mrb[0].mxu0
      %538 = vmatprep.mubr.bf16.mxu0 0
      %539 = vmatmul.mubr.bf16.gmra.mrb[0].mxu0 %v419
      %v540 = vpop.f32.mrb[0].mxu0
      %v541 = vadd.f32 0.0, %v540
      %v542 = vpop.f32.mrb[0].mxu0
      %v543 = vpop.f32.mrb[0].mxu0
      %v544 = vadd.f32 0.0, %v543
      %v545 = vpop.f32.mrb[0].mxu0
      %546 = vmatprep.mubr.bf16.mxu0 0
      %547 = vmatmul.mubr.bf16.gmra.mrb[0].mxu0 %v422
      %v548 = vpop.f32.mrb[0].mxu0
      %v549 = vadd.f32 0.0, %v548
      %v550 = vpop.f32.mrb[0].mxu0
      %v551 = vpop.f32.mrb[0].mxu0
      %v552 = vadd.f32 0.0, %v551
      %v553 = vpop.f32.mrb[0].mxu0
      %554 = vmatprep.mubr.bf16.mxu0 0
      %555 = vmatmul.mubr.bf16.gmra.mrb[0].mxu0 %v425
      %v556 = vpop.f32.mrb[0].mxu0
      %v557 = vadd.f32 0.0, %v556
      %v558 = vpop.f32.mrb[0].mxu0
      %v559 = vpop.f32.mrb[0].mxu0
      %v560 = vadd.f32 0.0, %v559
      %v561 = vpop.f32.mrb[0].mxu0
      %562 = vmatprep.mubr.bf16.mxu0 0
      %563 = vmatmul.mubr.bf16.gmra.mrb[0].mxu0 %v428
      %v564 = vpop.f32.mrb[0].mxu0
      %v565 = vadd.f32 0.0, %v564
      %v566 = vpop.f32.mrb[0].mxu0
      %v567 = vpop.f32.mrb[0].mxu0
      %v568 = vadd.f32 0.0, %v567
      %v569 = vpop.f32.mrb[0].mxu0
      %570 = vmatprep.mubr.bf16.mxu0 0
      %571 = vmatmul.mubr.bf16.gmra.mrb[0].mxu0 %v431
      %v572 = vpop.f32.mrb[0].mxu0
      %v573 = vadd.f32 0.0, %v572
      %v574 = vpop.f32.mrb[0].mxu0
      %v575 = vpop.f32.mrb[0].mxu0
      %v576 = vadd.f32 0.0, %v575
      %v577 = vpop.f32.mrb[0].mxu0
      %578 = vmatprep.mubr.bf16.mxu0 0
      %579 = vmatmul.mubr.bf16.gmra.mrb[0].mxu0 %v434
      %v580 = vpop.f32.mrb[0].mxu0
      %v581 = vadd.f32 0.0, %v580
      %v582 = vpop.f32.mrb[0].mxu0
      %v583 = vpop.f32.mrb[0].mxu0
      %v584 = vadd.f32 0.0, %v583
      %v585 = vpop.f32.mrb[0].mxu0
      %586 = vmatprep.mubr.bf16.mxu0 0
      %587 = vmatmul.mubr.bf16.gmra.mrb[0].mxu0 %v437
      %v588 = vpop.f32.mrb[0].mxu0
      %v589 = vadd.f32 0.0, %v588
      %v590 = vpop.f32.mrb[0].mxu0
      %v591 = vpop.f32.mrb[0].mxu0
      %v592 = vadd.f32 0.0, %v591
      %v593 = vpop.f32.mrb[0].mxu0
      %594 = vmatprep.mubr.bf16.mxu0 0
      %595 = vmatmul.mubr.bf16.gmra.mrb[0].mxu0 %v440
      %v596 = vpop.f32.mrb[0].mxu0
      %v597 = vadd.f32 0.0, %v596
      %v598 = vpop.f32.mrb[0].mxu0
      %v599 = vpop.f32.mrb[0].mxu0
      %v600 = vadd.f32 0.0, %v599
      %v601 = vpop.f32.mrb[0].mxu0
      %602 = vdwg.mxu0
      %v603 = vld [vmem:[%s249] sm:$0x1]
      %v604 = vlaneseq
      %v605 = vshrl.u32 %v604, 7
      %v606 = vsub.s32 0, %v605
      %v607 = vrot.slane %v603, %v606
      %v608 = vmul.f32 %v477, %v607
      %v609 = vmul.f32 %v480, %v607
      %v610 = vmul.f32 %v485, %v607
      %v611 = vmul.f32 %v488, %v607
      %v612 = vmul.f32 %v493, %v607
      %v613 = vmul.f32 %v496, %v607
      %v614 = vmul.f32 %v501, %v607
      %v615 = vmul.f32 %v504, %v607
      %v616 = vmul.f32 %v509, %v607
      %v617 = vmul.f32 %v512, %v607
      %v618 = vmul.f32 %v517, %v607
      %v619 = vmul.f32 %v520, %v607
      %v620 = vmul.f32 %v525, %v607
      %v621 = vmul.f32 %v528, %v607
      %v622 = vmul.f32 %v533, %v607
      %v623 = vmul.f32 %v536, %v607
      %v624 = vmul.f32 %v541, %v607
      %v625 = vmul.f32 %v544, %v607
      %v626 = vmul.f32 %v549, %v607
      %v627 = vmul.f32 %v552, %v607
      %v628 = vmul.f32 %v557, %v607
      %v629 = vmul.f32 %v560, %v607
      %v630 = vmul.f32 %v565, %v607
      %v631 = vmul.f32 %v568, %v607
      %v632 = vmul.f32 %v573, %v607
      %v633 = vmul.f32 %v576, %v607
      %v634 = vmul.f32 %v581, %v607
      %v635 = vmul.f32 %v584, %v607
      %v636 = vmul.f32 %v589, %v607
      %v637 = vmul.f32 %v592, %v607
      %v638 = vmul.f32 %v597, %v607
      %v639 = vmul.f32 %v600, %v607
      %v640 = vld [vmem:[%s249 + $0x1] sm:$0x1]
      %v641 = vlaneseq
      %v642 = vshrl.u32 %v641, 7
      %v643 = vsub.s32 0, %v642
      %v644 = vrot.slane %v640, %v643
      %v645 = vadd.f32 %v608, %v644
      %v646 = vadd.f32 %v609, %v644
      %v647 = vadd.f32 %v610, %v644
      %v648 = vadd.f32 %v611, %v644
      %v649 = vadd.f32 %v612, %v644
      %v650 = vadd.f32 %v613, %v644
      %v651 = vadd.f32 %v614, %v644
      %v652 = vadd.f32 %v615, %v644
      %v653 = vadd.f32 %v616, %v644
      %v654 = vadd.f32 %v617, %v644
      %v655 = vadd.f32 %v618, %v644
      %v656 = vadd.f32 %v619, %v644
      %v657 = vadd.f32 %v620, %v644
      %v658 = vadd.f32 %v621, %v644
      %v659 = vadd.f32 %v622, %v644
      %v660 = vadd.f32 %v623, %v644
      %v661 = vadd.f32 %v624, %v644
      %v662 = vadd.f32 %v625, %v644
      %v663 = vadd.f32 %v626, %v644
      %v664 = vadd.f32 %v627, %v644
      %v665 = vadd.f32 %v628, %v644
      %v666 = vadd.f32 %v629, %v644
      %v667 = vadd.f32 %v630, %v644
      %v668 = vadd.f32 %v631, %v644
      %v669 = vadd.f32 %v632, %v644
      %v670 = vadd.f32 %v633, %v644
      %v671 = vadd.f32 %v634, %v644
      %v672 = vadd.f32 %v635, %v644
      %v673 = vadd.f32 %v636, %v644
      %v674 = vadd.f32 %v637, %v644
      %v675 = vadd.f32 %v638, %v644
      %v676 = vadd.f32 %v639, %v644
      %v677 = vmax.f32 %v645, 0.0
      %v678 = vmax.f32 %v646, 0.0
      %v679 = vmax.f32 %v647, 0.0
      %v680 = vmax.f32 %v648, 0.0
      %v681 = vmax.f32 %v649, 0.0
      %v682 = vmax.f32 %v650, 0.0
      %v683 = vmax.f32 %v651, 0.0
      %v684 = vmax.f32 %v652, 0.0
      %v685 = vmax.f32 %v653, 0.0
      %v686 = vmax.f32 %v654, 0.0
      %v687 = vmax.f32 %v655, 0.0
      %v688 = vmax.f32 %v656, 0.0
      %v689 = vmax.f32 %v657, 0.0
      %v690 = vmax.f32 %v658, 0.0
      %v691 = vmax.f32 %v659, 0.0
      %v692 = vmax.f32 %v660, 0.0
      %v693 = vmax.f32 %v661, 0.0
      %v694 = vmax.f32 %v662, 0.0
      %v695 = vmax.f32 %v663, 0.0
      %v696 = vmax.f32 %v664, 0.0
      %v697 = vmax.f32 %v665, 0.0
      %v698 = vmax.f32 %v666, 0.0
      %v699 = vmax.f32 %v667, 0.0
      %v700 = vmax.f32 %v668, 0.0
      %v701 = vmax.f32 %v669, 0.0
      %v702 = vmax.f32 %v670, 0.0
      %v703 = vmax.f32 %v671, 0.0
      %v704 = vmax.f32 %v672, 0.0
      %v705 = vmax.f32 %v673, 0.0
      %v706 = vmax.f32 %v674, 0.0
      %v707 = vmax.f32 %v675, 0.0
      %v708 = vmax.f32 %v676, 0.0
      %709 = vst [vmem:[%s262] sm:$0xff] %v677
      %710 = vst [vmem:[%s262 + $0x8] sm:$0xff] %v678
      %711 = vst [vmem:[%s262 + $0x10] sm:$0xff] %v679
      %712 = vst [vmem:[%s262 + $0x18] sm:$0xff] %v680
      %713 = vst [vmem:[%s262 + $0x20] sm:$0xff] %v681
      %714 = vst [vmem:[%s262 + $0x28] sm:$0xff] %v682
      %715 = vst [vmem:[%s262 + $0x30] sm:$0xff] %v683
      %716 = vst [vmem:[%s262 + $0x38] sm:$0xff] %v684
      %717 = vst [vmem:[%s262 + $0x40] sm:$0xff] %v685
      %718 = vst [vmem:[%s262 + $0x48] sm:$0xff] %v686
      %719 = vst [vmem:[%s262 + $0x50] sm:$0xff] %v687
      %720 = vst [vmem:[%s262 + $0x58] sm:$0xff] %v688
      %721 = vst [vmem:[%s262 + $0x60] sm:$0xff] %v689
      %722 = vst [vmem:[%s262 + $0x68] sm:$0xff] %v690
      %723 = vst [vmem:[%s262 + $0x70] sm:$0xff] %v691
      %724 = vst [vmem:[%s262 + $0x78] sm:$0xff] %v692
      %725 = vst [vmem:[%s262 + $0x80] sm:$0xff] %v693
      %726 = vst [vmem:[%s262 + $0x88] sm:$0xff] %v694
      %727 = vst [vmem:[%s262 + $0x90] sm:$0xff] %v695
      %728 = vst [vmem:[%s262 + $0x98] sm:$0xff] %v696
      %729 = vst [vmem:[%s262 + $0xa0] sm:$0xff] %v697
      %730 = vst [vmem:[%s262 + $0xa8] sm:$0xff] %v698
      %731 = vst [vmem:[%s262 + $0xb0] sm:$0xff] %v699
      %732 = vst [vmem:[%s262 + $0xb8] sm:$0xff] %v700
      %733 = vst [vmem:[%s262 + $0xc0] sm:$0xff] %v701
      %734 = vst [vmem:[%s262 + $0xc8] sm:$0xff] %v702
      %735 = vst [vmem:[%s262 + $0xd0] sm:$0xff] %v703
      %736 = vst [vmem:[%s262 + $0xd8] sm:$0xff] %v704
      %737 = vst [vmem:[%s262 + $0xe0] sm:$0xff] %v705
      %738 = vst [vmem:[%s262 + $0xe8] sm:$0xff] %v706
      %739 = vst [vmem:[%s262 + $0xf0] sm:$0xff] %v707
      %740 = vst [vmem:[%s262 + $0xf8] sm:$0xff] %v708
      %s741 = smul.u32 16, %s21
      %p742 = scmp.lt.s32.totalorder %s19, 1
      %s743 = scalar_select %p742, %s19, 1
      %p744 = scmp.lt.s32.totalorder %s741, 15
      %s745 = scalar_select %p744, %s741, 15
      %p746 = scmp.lt.s32.totalorder %s20, 0
      %s747 = scalar_select %p746, %s20, 0
      %s748 = smul.addr %s745, 2
      %s749 = sadd.s32 %s747, %s748
      %s750 = smul.addr %s743, 32
      %s751 = sadd.s32 %s749, %s750
      %s752 = smul.addr %s751, 8
      %s753 = scalar_lea.vmem %s3, %s752
      // Predicated region
      $region33: #{conv_transpose2d_block.1} parent=31 // pred_check
        %p754 = pneg %p135
      $region34: #{conv_transpose2d_block.1} parent=31 // pred_check_branch
        %756 = sbr.rel (%p754) target = $region36
      $region35: #{conv_transpose2d_block.1} parent=31 // pred_region
        %s757 = smul.u32 16, %s21
      $region36: #{conv_transpose2d_block.1} parent=31 // pred_fallthru
        _
    $region32: #{conv_transpose2d_block.1} parent=5 // pred_fallthru
      _
    %p758 = scmp.le.s32.totalorder 2, %s9
    // Predicated region
    $region37: #{conv_transpose2d_block.1} parent=5 // pred_check
      %p759 = pneg %p758
    $region38: #{conv_transpose2d_block.1} parent=5 // pred_check_branch
      %761 = sbr.rel (%p759) target = $region40
    $region39: #{conv_transpose2d_block.1} parent=5 // pred_region
      %s762 = ssub.s32 %s9, 2
      // Predicated region
      $region41: #{conv_transpose2d_block.1} parent=39 // pred_check
        %p763 = pneg %p141
      $region42: #{conv_transpose2d_block.1} parent=39 // pred_check_branch
        %765 = sbr.rel (%p763) target = $region44
      $region43: #{conv_transpose2d_block.1} parent=39 // pred_region
        %s766 = smul.u32 16, %s24
        %p767 = scmp.lt.s32.totalorder %s22, 1
        %s768 = scalar_select %p767, %s22, 1
        %p769 = scmp.lt.s32.totalorder %s766, 15
        %s770 = scalar_select %p769, %s766, 15
        %p771 = scmp.lt.s32.totalorder %s23, 0
        %s772 = scalar_select %p771, %s23, 0
        %s773 = smul.addr %s770, 2
        %s774 = sadd.s32 %s772, %s773
        %s775 = smul.addr %s768, 32
        %s776 = sadd.s32 %s774, %s775
        %s777 = smul.addr %s776, 8
        %s778 = scalar_lea.vmem %s3, %s777
      $region44: #{conv_transpose2d_block.1} parent=39 // pred_fallthru
        _
    $region40: #{conv_transpose2d_block.1} parent=5 // pred_fallthru
      _
  $region6: #{conv_transpose2d_block.1} parent=0 // loop_footer
    %s13 = sadd.s32 1, %s9
  $region7: #{conv_transpose2d_block.1} parent=0 // loop_footer_branch
    %8 = sbr.rel target = $region3
  $region8: #{conv_transpose2d_block.1} parent=0 // loop_exit
    _

</llo_original>
